<compile_context>
chip_gen: v7x
topology: tpu7x:2x2x1
jax: 0.10.0
libtpu: 0.0.40
codegen_flags: <defaults>
</compile_context>

<pallas_src>
import functools

import jax
import jax.numpy as jnp
from jax import lax
from jax.experimental import pallas as pl
from jax.experimental.pallas import tpu as pltpu


# ----------------------------------------------------------------------------
# hardware / tiling helpers
# ----------------------------------------------------------------------------
def _physical_vmem_bytes():
    """Per-core physical VMEM; falls back to the smallest value (v7x, 64 MiB)."""
    try:
        info = pltpu.get_tpu_info()
        v = getattr(info, "vmem_capacity_bytes", None)
        if v:
            return int(v)
    except Exception:
        pass
    return 64 << 20


def _vmem_limit(estimate_bytes, physical_bytes):
    """Scoped-VMEM request: generous on 128 MiB parts (v5e/v6e), ~8 MiB of
    headroom for double buffers + Mosaic internal scratch on 64 MiB parts."""
    cap = max(16 << 20, min(100 << 20, physical_bytes - (8 << 20)))
    return int(min(cap, max(32 << 20, int(estimate_bytes))))


def _pick_row_tile(total_units, row_unit, n_lanes, itemsize, *, row_target=256,
                   max_block_bytes=2 << 20, max_units=None):
    """Units (of `row_unit` rows each) processed per grid step.

    Targets >= `row_target` matmul rows per step (MXU fill), keeps each block
    under `max_block_bytes`, keeps the sublane extent a multiple of 8 (or the
    full extent, per the (8, 128) block rule), forces >= 2 grid steps when
    possible and prefers an even step count (v7x has 2 TensorCores).
    """
    unit_bytes = max(1, row_unit * n_lanes * itemsize)
    cap = min(max(1, (2 * row_target) // max(1, row_unit)),
              max(1, max_block_bytes // unit_bytes))
    if max_units is not None:
        cap = min(cap, max_units)
    if total_units >= 2:
        cap = min(cap, total_units // 2)          # >= 2 grid steps
    cap = max(1, min(cap, total_units))

    def legal(t):
        return total_units % t == 0 and ((t * row_unit) % 8 == 0 or t == total_units)

    cands = [t for t in range(cap, 0, -1) if legal(t)]
    if not cands:
        return total_units                        # full extent is always legal
    even = [t for t in cands if (total_units // t) % 2 == 0]
    filled = [t for t in cands if t * row_unit >= row_target]
    even_filled = [t for t in even if t * row_unit >= row_target]
    if even_filled:
        return even_filled[0]
    if filled:
        return filled[0]
    if even:
        return even[0]
    return cands[0]


# ----------------------------------------------------------------------------
# Pass 1: qk/v Linears + L2-normalize + channel attention, transposed write.
# ----------------------------------------------------------------------------
def _attn_kernel(*refs, bt, channels, n_inner, scale, fused, sub_max,
                 approx_recip):
    if fused:
        x_ref, w_ref, b_ref, ot_ref, q_s, k_s, v_s = refs
    else:
        (x_ref, wq_ref, bq_ref, wk_ref, bk_ref, wv_ref, bv_ref,
         ot_ref, q_s, k_s, v_s) = refs

    mm = q_s.dtype                                  # matmul operand dtype
    x = x_ref[...]
    if x.dtype != mm:
        x = x.astype(mm)                            # cast once, in-kernel

    # Row-independent Linears on the whole slab (MXU M-dim well filled),
    # f32 accumulation + f32 bias add.
    if fused:
        qkv = jnp.dot(x, w_ref[...], preferred_element_type=jnp.float32) + b_ref[...]
        q = qkv[:, :n_inner]
        k = qkv[:, n_inner:2 * n_inner]
        v = qkv[:, 2 * n_inner:]
    else:
        q = jnp.dot(x, wq_ref[...], preferred_element_type=jnp.float32) + bq_ref[...]
        k = jnp.dot(x, wk_ref[...], preferred_element_type=jnp.float32) + bk_ref[...]
        v = jnp.dot(x, wv_ref[...], preferred_element_type=jnp.float32) + bv_ref[...]

    # F.normalize(p=2, dim=-1, eps=1e-12) in f32; rsqrt uses the EUP slot.
    # qk_scale is folded into q so the per-batch loop never rescales attn.
    qn = jnp.maximum(jnp.sum(q * q, axis=-1, keepdims=True), 1e-24)
    kn = jnp.maximum(jnp.sum(k * k, axis=-1, keepdims=True), 1e-24)
    q_s[...] = (q * (lax.rsqrt(qn) * scale)).astype(mm)
    k_s[...] = (k * lax.rsqrt(kn)).astype(mm)
    v_s[...] = v.astype(mm)

    def body(b, carry):
        r0 = b * channels
        if channels % 8 == 0:
            r0 = pl.multiple_of(r0, 8)
        qb = q_s[pl.ds(r0, channels), :]
        kb = k_s[pl.ds(r0, channels), :]
        vb = v_s[pl.ds(r0, channels), :]

        # attn = k @ q^T : contract the shared last dims (no materialized q^T).
        attn = lax.dot_general(kb, qb, (((1,), (1,)), ((), ())),
                               preferred_element_type=jnp.float32)
        if sub_max:
            attn = attn - jnp.max(attn, axis=-1, keepdims=True)
        e = jnp.exp(attn)
        p = e * pl.reciprocal(jnp.sum(e, axis=-1, keepdims=True),
                              approx=approx_recip)
        p = p.astype(mm)
        # attn_drop: p = 0.0 -> identity.
        # (attn @ v)^T directly off the MXU: contract vb dim 0 with p dim 1,
        # result is (N, C) with M = N rows (no XLU transpose, better MXU fill).
        out_nc = lax.dot_general(vb, p, (((0,), (1,)), ((), ())),
                                 preferred_element_type=jnp.float32)
        ot_ref[b] = out_nc.astype(ot_ref.dtype)
        return carry

    lax.fori_loop(0, bt, body, 0)


# ----------------------------------------------------------------------------
# Pass 2: output projection  y = mixed @ Wp^T + bp  on large lane-dense tiles.
# ----------------------------------------------------------------------------
def _proj_kernel(m_ref, wp_ref, bp_ref, o_ref):
    mm = wp_ref.dtype
    m = m_ref[...]
    if m.dtype != mm:
        m = m.astype(mm)
    y = jnp.dot(m, wp_ref[...], preferred_element_type=jnp.float32) + bp_ref[...]
    # proj_drop: p = 0.0 -> identity.
    o_ref[...] = y.astype(o_ref.dtype)


# ----------------------------------------------------------------------------
# Wrapper
# ----------------------------------------------------------------------------
def channel_attention_v2(x, params, *, sequence, factor, qk_scale=None,
                         matmul_dtype=jnp.bfloat16):
    """Forward pass of ChannelAttentionV2.  x: (B, C, N), N == sequence.

    MXU operands (activations + weights) default to bf16 with f32
    accumulation / normalize / softmax; pass matmul_dtype=None to keep all
    matmuls in the input dtype.
    """
    B, C, N = x.shape
    assert N == sequence, f"last dim {N} must equal sequence {sequence}"
    n_inner = int(sequence * factor)
    scale = float(qk_scale) if qk_scale is not None else float(sequence) ** -0.5

    wqk, bqk, wv, bv, wp, bp = params               # torch Linear layout: (out, in)
    mm_dtype = jnp.dtype(matmul_dtype) if matmul_dtype is not None else jnp.dtype(x.dtype)

    physical = _physical_vmem_bytes()
    small_vmem = physical <= (64 << 20)             # v7x
    max_block_bytes = (2 << 20) if small_vmem else (6 << 20)

    x_item = jnp.dtype(x.dtype).itemsize
    w_item = mm_dtype.itemsize
    n_tot = 2 * n_inner + N

    # Weight prep (done once in XLA; weights are resident every grid step).
    wq_t = wqk[:n_inner, :].T.astype(mm_dtype)      # (N, n_inner)
    wk_t = wqk[n_inner:, :].T.astype(mm_dtype)      # (N, n_inner)
    wv_t = wv.T.astype(mm_dtype)                    # (N, N)
    wp_t = wp.T.astype(mm_dtype)                    # (N, N)
    bq2 = bqk[:n_inner].reshape(1, n_inner).astype(jnp.float32)
    bk2 = bqk[n_inner:].reshape(1, n_inner).astype(jnp.float32)
    bv2 = bv.reshape(1, N).astype(jnp.float32)
    bp2 = bp.reshape(1, N).astype(jnp.float32)

    # Fuse the three Linears into one MXU pass only when the q/k/v lane slices
    # land on 128-aligned offsets; otherwise keep three matmuls (no misaligned
    # lane relayouts inside the kernel).
    fused = (n_inner % 128 == 0)
    if fused:
        w_all = jnp.concatenate([wq_t, wk_t, wv_t], axis=1)   # (N, n_tot)
        b_all = jnp.concatenate([bq2, bk2, bv2], axis=1)       # (1, n_tot)

    full = lambda shape: pl.BlockSpec(shape, lambda g: (0,) * len(shape))

    # ------------------- pass 1: Linears + channel attention -----------------
    bt = _pick_row_tile(B, C, N, x_item, row_target=256,
                        max_block_bytes=max_block_bytes, max_units=8)
    rows1 = bt * C
    x2 = x.reshape(B * C, N)                                   # free view

    est1 = (2 * N * n_tot * w_item                             # weights (double-buffered)
            + 2 * rows1 * N * x_item                           # x blocks
            + 2 * bt * N * C * x_item                          # output blocks
            + rows1 * n_tot * w_item                           # q/k/v scratch
            + rows1 * n_tot * 4                                # f32 matmul results
            + 4 * (C * C + N * C) * 4                          # per-batch f32 tiles
            + (4 << 20))                                       # Mosaic internals / slack

    # q, k are unit-norm so logits are bounded by |scale|; skip the row-max
    # subtraction unless a user-supplied qk_scale is large.
    sub_max = abs(scale) > 16.0
    approx_recip = mm_dtype != jnp.dtype(jnp.float32)

    kernel1 = functools.partial(
        _attn_kernel, bt=bt, channels=C, n_inner=n_inner, scale=scale,
        fused=fused, sub_max=sub_max, approx_recip=approx_recip)

    if fused:
        operands = (x2, w_all, b_all)
        in_specs = [pl.BlockSpec((rows1, N), lambda g: (g, 0)),
                    full((N, n_tot)), full((1, n_tot))]
    else:
        operands = (x2, wq_t, bq2, wk_t, bk2, wv_t, bv2)
        in_specs = [pl.BlockSpec((rows1, N), lambda g: (g, 0)),
                    full((N, n_inner)), full((1, n_inner)),
                    full((N, n_inner)), full((1, n_inner)),
                    full((N, N)), full((1, N))]

    attn_t = pl.pallas_call(
        kernel1,
        out_shape=jax.ShapeDtypeStruct((B, N, C), x.dtype),
        grid_spec=pltpu.PrefetchScalarGridSpec(
            num_scalar_prefetch=0,
            grid=(B // bt,),
            in_specs=in_specs,
            out_specs=pl.BlockSpec((bt, N, C), lambda g: (g, 0, 0)),
            scratch_shapes=[pltpu.VMEM((rows1, n_inner), mm_dtype),
                            pltpu.VMEM((rows1, n_inner), mm_dtype),
                            pltpu.VMEM((rows1, N), mm_dtype)]),
        compiler_params=pltpu.CompilerParams(
            dimension_semantics=("parallel",),
            vmem_limit_bytes=_vmem_limit(est1, physical)),
    )(*operands)

    # Reference: `(attn @ v).transpose(1, 2).reshape(B, C, N)`.  Pass 1 already
    # wrote the (B, N, C) layout, so this reshape is a free row-major view.
    mixed = attn_t.reshape(B * C, N)

    # ------------------- pass 2: output projection ---------------------------
    rp = _pick_row_tile(B * C, 1, N, x_item, row_target=256,
                        max_block_bytes=max_block_bytes)
    est2 = (2 * N * N * w_item + 4 * rp * N * x_item + 2 * rp * N * 4 + (4 << 20))

    y = pl.pallas_call(
        _proj_kernel,
        out_shape=jax.ShapeDtypeStruct((B * C, N), x.dtype),
        grid_spec=pltpu.PrefetchScalarGridSpec(
            num_scalar_prefetch=0,
            grid=(B * C // rp,),
            in_specs=[pl.BlockSpec((rp, N), lambda g: (g, 0)),
                      full((N, N)), full((1, N))],
            out_specs=pl.BlockSpec((rp, N), lambda g: (g, 0)),
        ),
        compiler_params=pltpu.CompilerParams(
            dimension_semantics=("parallel",),
            vmem_limit_bytes=_vmem_limit(est2, physical)),
    )(mixed, wp_t, bp2)

    return y.reshape(B, C, N)


# ----------------------------------------------------------------------------
# Pure-JAX reference (mirrors the PyTorch forward) for a sanity check.
# ----------------------------------------------------------------------------
def _reference(x, params, *, sequence, factor, qk_scale=None):
    B, C, N = x.shape
    n_inner = int(sequence * factor)
    scale = qk_scale if qk_scale is not None else sequence ** (-0.5)
    wqk, bqk, wv, bv, wp, bp = params
    qk = x @ wqk.T + bqk
    qk = qk.reshape(B, C, 2, n_inner).transpose(2, 0, 1, 3)
    q, k = qk[0], qk[1]
    v = x @ wv.T + bv
    l2n = lambda a: a / jnp.maximum(
        jnp.sqrt(jnp.sum(a * a, axis=-1, keepdims=True)), 1e-12)
    q, k = l2n(q), l2n(k)
    attn = jnp.einsum("bcd,bed->bce", k, q) * scale
    attn = jax.nn.softmax(attn, axis=-1)
    out = attn @ v
    out = jnp.transpose(out, (0, 2, 1)).reshape(B, C, N)
    return out @ wp.T + bp


if __name__ == "__main__":
    # Small shapes consistent with the module: x is (B, C, N) with N = sequence.
    B, C, N = 2, 8, 16
    sequence, factor = N, 0.5
    n_inner = int(sequence * factor)

    key = jax.random.PRNGKey(0)
    kx, k1, k2, k3, k4, k5, k6 = jax.random.split(key, 7)
    x = jax.random.normal(kx, (B, C, N), dtype=jnp.float32)

    # Deterministic parameter init (torch Linear layout: W is (out, in)).
    wqk = 0.05 * jax.random.normal(k1, (2 * n_inner, N), dtype=jnp.float32)
    bqk = 0.05 * jax.random.normal(k2, (2 * n_inner,), dtype=jnp.float32)
    wv = 0.05 * jax.random.normal(k3, (N, N), dtype=jnp.float32)
    bv = 0.05 * jax.random.normal(k4, (N,), dtype=jnp.float32)
    wp = 0.05 * jax.random.normal(k5, (N, N), dtype=jnp.float32)
    bp = 0.05 * jax.random.normal(k6, (N,), dtype=jnp.float32)
    params = (wqk, bqk, wv, bv, wp, bp)

    y_ref = _reference(x, params, sequence=sequence, factor=factor)

    # f32 MXU operands -> tight tolerance against the reference.
    y32 = channel_attention_v2(x, params, sequence=sequence, factor=factor,
                               matmul_dtype=None)
    y32 = jax.block_until_ready(y32)
    assert y32.shape == (B, C, N)
    assert jnp.allclose(y32, y_ref, rtol=1e-4, atol=1e-4), \
        float(jnp.max(jnp.abs(y32 - y_ref)))

    # Default path: bf16 MXU operands, f32 accumulation -> looser tolerance
    # (addresses the review's "bf16 path never exercised" concern).
    ybf = channel_attention_v2(x, params, sequence=sequence, factor=factor)
    ybf = jax.block_until_ready(ybf)
    assert ybf.shape == (B, C, N)
    assert jnp.allclose(ybf, y_ref, rtol=3e-2, atol=3e-2), \
        float(jnp.max(jnp.abs(ybf - y_ref)))

    print("KERNEL_OK")
</pallas_src>

<mosaic_0001>
module attributes {stable_mosaic.version = 11 : i64} {
  func.func @_attn_kernel(%arg0: i32, %arg1: memref<8x16xf32, #tpu.memory_space<vmem>>, %arg2: memref<16x8xf32, #tpu.memory_space<vmem>>, %arg3: memref<1x8xf32, #tpu.memory_space<vmem>>, %arg4: memref<16x8xf32, #tpu.memory_space<vmem>>, %arg5: memref<1x8xf32, #tpu.memory_space<vmem>>, %arg6: memref<16x16xf32, #tpu.memory_space<vmem>>, %arg7: memref<1x16xf32, #tpu.memory_space<vmem>>, %arg8: memref<1x16x8xf32, #tpu.memory_space<vmem>>, %arg9: memref<8x8xf32, #tpu.memory_space<vmem>>, %arg10: memref<8x8xf32, #tpu.memory_space<vmem>>, %arg11: memref<8x16xf32, #tpu.memory_space<vmem>>) attributes {dimension_semantics = [#tpu.dimension_semantics<parallel>], iteration_bounds = array<i64: 2>, scalar_prefetch = 0 : i64, scratch_operands = 3 : i64, tpu.core_type = #tpu.core_type<tc>, window_params = [{transform_indices = @transform_0, window_bounds = array<i64: 8, 16>}, {pipeline_mode = #tpu.pipeline_mode<synchronous>, transform_indices = @transform_1, window_bounds = array<i64: 16, 8>}, {pipeline_mode = #tpu.pipeline_mode<synchronous>, transform_indices = @transform_2, window_bounds = array<i64: 1, 8>}, {pipeline_mode = #tpu.pipeline_mode<synchronous>, transform_indices = @transform_3, window_bounds = array<i64: 16, 8>}, {pipeline_mode = #tpu.pipeline_mode<synchronous>, transform_indices = @transform_4, window_bounds = array<i64: 1, 8>}, {pipeline_mode = #tpu.pipeline_mode<synchronous>, transform_indices = @transform_5, window_bounds = array<i64: 16, 16>}, {pipeline_mode = #tpu.pipeline_mode<synchronous>, transform_indices = @transform_6, window_bounds = array<i64: 1, 16>}, {transform_indices = @transform_7, window_bounds = array<i64: 1, 16, 8>}]} {
    %c0 = arith.constant 0 : index
    %c0_0 = arith.constant 0 : index
    %0 = vector.load %arg1[%c0, %c0_0] : memref<8x16xf32, #tpu.memory_space<vmem>>, vector<8x16xf32>
    %c0_1 = arith.constant 0 : index
    %c0_2 = arith.constant 0 : index
    %1 = vector.load %arg2[%c0_1, %c0_2] : memref<16x8xf32, #tpu.memory_space<vmem>>, vector<16x8xf32>
    %cst = arith.constant dense<0.000000e+00> : vector<8x8xf32>
    %2 = tpu.matmul %0, %1, %cst {dimension_numbers = #tpu.dot_dimension_numbers<[1], [0], [0], [1], [0, 0, 1, 1], [], []>} : vector<8x16xf32>, vector<16x8xf32>, vector<8x8xf32> -> vector<8x8xf32>
    %c0_3 = arith.constant 0 : index
    %c0_4 = arith.constant 0 : index
    %3 = vector.load %arg3[%c0_3, %c0_4] : memref<1x8xf32, #tpu.memory_space<vmem>>, vector<1x8xf32>
    %4 = vector.broadcast %3 : vector<1x8xf32> to vector<8x8xf32>
    %5 = arith.addf %2, %4 : vector<8x8xf32>
    %c0_5 = arith.constant 0 : index
    %c0_6 = arith.constant 0 : index
    %6 = vector.load %arg4[%c0_5, %c0_6] : memref<16x8xf32, #tpu.memory_space<vmem>>, vector<16x8xf32>
    %cst_7 = arith.constant dense<0.000000e+00> : vector<8x8xf32>
    %7 = tpu.matmul %0, %6, %cst_7 {dimension_numbers = #tpu.dot_dimension_numbers<[1], [0], [0], [1], [0, 0, 1, 1], [], []>} : vector<8x16xf32>, vector<16x8xf32>, vector<8x8xf32> -> vector<8x8xf32>
    %c0_8 = arith.constant 0 : index
    %c0_9 = arith.constant 0 : index
    %8 = vector.load %arg5[%c0_8, %c0_9] : memref<1x8xf32, #tpu.memory_space<vmem>>, vector<1x8xf32>
    %9 = vector.broadcast %8 : vector<1x8xf32> to vector<8x8xf32>
    %10 = arith.addf %7, %9 : vector<8x8xf32>
    %c0_10 = arith.constant 0 : index
    %c0_11 = arith.constant 0 : index
    %11 = vector.load %arg6[%c0_10, %c0_11] : memref<16x16xf32, #tpu.memory_space<vmem>>, vector<16x16xf32>
    %cst_12 = arith.constant dense<0.000000e+00> : vector<8x16xf32>
    %12 = tpu.matmul %0, %11, %cst_12 {dimension_numbers = #tpu.dot_dimension_numbers<[1], [0], [0], [1], [0, 0, 1, 1], [], []>} : vector<8x16xf32>, vector<16x16xf32>, vector<8x16xf32> -> vector<8x16xf32>
    %c0_13 = arith.constant 0 : index
    %c0_14 = arith.constant 0 : index
    %13 = vector.load %arg7[%c0_13, %c0_14] : memref<1x16xf32, #tpu.memory_space<vmem>>, vector<1x16xf32>
    %14 = vector.broadcast %13 : vector<1x16xf32> to vector<8x16xf32>
    %15 = arith.addf %12, %14 : vector<8x16xf32>
    %16 = arith.mulf %5, %5 : vector<8x8xf32>
    %cst_15 = arith.constant dense<0.000000e+00> : vector<8xf32>
    %17 = vector.multi_reduction <add>, %16, %cst_15 [1] : vector<8x8xf32> to vector<8xf32>
    %18 = vector.shape_cast %17 : vector<8xf32> to vector<8x1xf32>
    %cst_16 = arith.constant 1.000000e-24 : f32
    %19 = vector.broadcast %cst_16 : f32 to vector<8x1xf32>
    %20 = arith.maximumf %18, %19 : vector<8x1xf32>
    %21 = arith.mulf %10, %10 : vector<8x8xf32>
    %cst_17 = arith.constant dense<0.000000e+00> : vector<8xf32>
    %22 = vector.multi_reduction <add>, %21, %cst_17 [1] : vector<8x8xf32> to vector<8xf32>
    %23 = vector.shape_cast %22 : vector<8xf32> to vector<8x1xf32>
    %cst_18 = arith.constant 1.000000e-24 : f32
    %24 = vector.broadcast %cst_18 : f32 to vector<8x1xf32>
    %25 = arith.maximumf %23, %24 : vector<8x1xf32>
    %26 = math.rsqrt %20 : vector<8x1xf32>
    %cst_19 = arith.constant 2.500000e-01 : f32
    %27 = vector.broadcast %cst_19 : f32 to vector<8x1xf32>
    %28 = arith.mulf %26, %27 : vector<8x1xf32>
    %29 = vector.broadcast %28 : vector<8x1xf32> to vector<8x8xf32>
    %30 = arith.mulf %5, %29 : vector<8x8xf32>
    %c0_20 = arith.constant 0 : index
    %c0_21 = arith.constant 0 : index
    %31 = vector.load %arg9[%c0_20, %c0_21] : memref<8x8xf32, #tpu.memory_space<vmem>>, vector<8x8xf32>
    tpu.vector_store %arg9[%c0_20, %c0_21], %30 {strides = array<i32>} : memref<8x8xf32, #tpu.memory_space<vmem>>, vector<8x8xf32>,
    %32 = math.rsqrt %25 : vector<8x1xf32>
    %33 = vector.broadcast %32 : vector<8x1xf32> to vector<8x8xf32>
    %34 = arith.mulf %10, %33 : vector<8x8xf32>
    %c0_22 = arith.constant 0 : index
    %c0_23 = arith.constant 0 : index
    %35 = vector.load %arg10[%c0_22, %c0_23] : memref<8x8xf32, #tpu.memory_space<vmem>>, vector<8x8xf32>
    tpu.vector_store %arg10[%c0_22, %c0_23], %34 {strides = array<i32>} : memref<8x8xf32, #tpu.memory_space<vmem>>, vector<8x8xf32>,
    %c0_24 = arith.constant 0 : index
    %c0_25 = arith.constant 0 : index
    %36 = vector.load %arg11[%c0_24, %c0_25] : memref<8x16xf32, #tpu.memory_space<vmem>>, vector<8x16xf32>
    tpu.vector_store %arg11[%c0_24, %c0_25], %15 {strides = array<i32>} : memref<8x16xf32, #tpu.memory_space<vmem>>, vector<8x16xf32>,
    %c0_i32 = arith.constant 0 : i32
    %c8_i32 = arith.constant 8 : i32
    %37 = arith.muli %c0_i32, %c8_i32 : i32
    %38 = tpu.assume_multiple %37, 8 : i32
    %39 = arith.index_cast %38 : i32 to index
    %c0_26 = arith.constant 0 : index
    %40 = vector.load %arg9[%39, %c0_26] : memref<8x8xf32, #tpu.memory_space<vmem>>, vector<8x8xf32>
    %41 = arith.index_cast %38 : i32 to index
    %c0_27 = arith.constant 0 : index
    %42 = vector.load %arg10[%41, %c0_27] : memref<8x8xf32, #tpu.memory_space<vmem>>, vector<8x8xf32>
    %43 = arith.index_cast %38 : i32 to index
    %c0_28 = arith.constant 0 : index
    %44 = vector.load %arg11[%43, %c0_28] : memref<8x16xf32, #tpu.memory_space<vmem>>, vector<8x16xf32>
    %cst_29 = arith.constant dense<0.000000e+00> : vector<8x8xf32>
    %45 = tpu.matmul %42, %40, %cst_29 {dimension_numbers = #tpu.dot_dimension_numbers<[1], [1], [0], [0], [0, 0, 1, 0], [], []>} : vector<8x8xf32>, vector<8x8xf32>, vector<8x8xf32> -> vector<8x8xf32>
    %46 = math.exp %45 : vector<8x8xf32>
    %cst_30 = arith.constant dense<0.000000e+00> : vector<8xf32>
    %47 = vector.multi_reduction <add>, %46, %cst_30 [1] : vector<8x8xf32> to vector<8xf32>
    %48 = vector.shape_cast %47 : vector<8xf32> to vector<8x1xf32>
    %49 = tpu.reciprocal %48 : vector<8x1xf32> -> vector<8x1xf32>
    %50 = vector.broadcast %49 : vector<8x1xf32> to vector<8x8xf32>
    %51 = arith.mulf %46, %50 : vector<8x8xf32>
    %cst_31 = arith.constant dense<0.000000e+00> : vector<16x8xf32>
    %52 = tpu.matmul %44, %51, %cst_31 {dimension_numbers = #tpu.dot_dimension_numbers<[0], [1], [1], [0], [0, 1, 1, 0], [], []>} : vector<8x16xf32>, vector<8x8xf32>, vector<16x8xf32> -> vector<16x8xf32>
    %53 = arith.index_cast %c0_i32 : i32 to index
    %c0_32 = arith.constant 0 : index
    %c0_33 = arith.constant 0 : index
    %54 = vector.load %arg8[%53, %c0_32, %c0_33] : memref<1x16x8xf32, #tpu.memory_space<vmem>>, vector<1x16x8xf32>
    %55 = vector.shape_cast %54 : vector<1x16x8xf32> to vector<16x8xf32>
    %56 = vector.shape_cast %52 : vector<16x8xf32> to vector<1x16x8xf32>
    tpu.vector_store %arg8[%53, %c0_32, %c0_33], %56 {strides = array<i32>} : memref<1x16x8xf32, #tpu.memory_space<vmem>>, vector<1x16x8xf32>,
    %c1_i32 = arith.constant 1 : i32
    return
  }
  func.func @transform_0(%arg0: i32) -> (i32, i32) {
    %c0_i32 = arith.constant 0 : i32
    %c0_i32_0 = arith.constant 0 : i32
    return %arg0, %c0_i32 : i32, i32
  }
  func.func @transform_1(%arg0: i32) -> (i32, i32) {
    %c0_i32 = arith.constant 0 : i32
    %c0_i32_0 = arith.constant 0 : i32
    %c0_i32_1 = arith.constant 0 : i32
    return %c0_i32, %c0_i32_0 : i32, i32
  }
  func.func @transform_2(%arg0: i32) -> (i32, i32) {
    %c0_i32 = arith.constant 0 : i32
    %c0_i32_0 = arith.constant 0 : i32
    %c0_i32_1 = arith.constant 0 : i32
    return %c0_i32, %c0_i32_0 : i32, i32
  }
  func.func @transform_3(%arg0: i32) -> (i32, i32) {
    %c0_i32 = arith.constant 0 : i32
    %c0_i32_0 = arith.constant 0 : i32
    %c0_i32_1 = arith.constant 0 : i32
    return %c0_i32, %c0_i32_0 : i32, i32
  }
  func.func @transform_4(%arg0: i32) -> (i32, i32) {
    %c0_i32 = arith.constant 0 : i32
    %c0_i32_0 = arith.constant 0 : i32
    %c0_i32_1 = arith.constant 0 : i32
    return %c0_i32, %c0_i32_0 : i32, i32
  }
  func.func @transform_5(%arg0: i32) -> (i32, i32) {
    %c0_i32 = arith.constant 0 : i32
    %c0_i32_0 = arith.constant 0 : i32
    %c0_i32_1 = arith.constant 0 : i32
    return %c0_i32, %c0_i32_0 : i32, i32
  }
  func.func @transform_6(%arg0: i32) -> (i32, i32) {
    %c0_i32 = arith.constant 0 : i32
    %c0_i32_0 = arith.constant 0 : i32
    %c0_i32_1 = arith.constant 0 : i32
    return %c0_i32, %c0_i32_0 : i32, i32
  }
  func.func @transform_7(%arg0: i32) -> (i32, i32, i32) {
    %c0_i32 = arith.constant 0 : i32
    %c0_i32_0 = arith.constant 0 : i32
    %c0_i32_1 = arith.constant 0 : i32
    return %arg0, %c0_i32, %c0_i32_0 : i32, i32, i32
  }
}

</mosaic_0001>

<llo_original>
// kernel: tpu_custom_call.1
$region0: #{tpu_custom_call.1}
  #allocation0 [shape = 'u32[]', space=smem, size = 0x4, offset = 0x4, fixed_abs, tag = 'smem constant byte address 0x4 - core index']
  #allocation1 [shape = 'u32[144,128]{1,0:T(1,128)}', space=vmem, size = 0x12000, scoped, tag = 'internal scratch']
  #allocation2 [shape = 'f32[8,8]{1,0:T(8,128)}', space=vmem, size = 0x1000, scoped, tag = 'scratch operand']
  #allocation3 [shape = 'f32[8,8]{1,0:T(8,128)}', space=vmem, size = 0x1000, scoped, tag = 'scratch operand']
  #allocation4 [shape = 'f32[8,16]{1,0:T(8,128)}', space=vmem, size = 0x1000, scoped, tag = 'scratch operand']
  %s0 = inlined_call_operand.vmem [shape: f32[16,16], index: 0, kind: input, shape index: {}]
  %s1 = inlined_call_operand.vmem [shape: f32[16,8], index: 1, kind: input, shape index: {}]
  %s2 = inlined_call_operand.vmem [shape: f32[1,8], index: 2, kind: input, shape index: {}]
  %s3 = inlined_call_operand.vmem [shape: f32[16,8], index: 3, kind: input, shape index: {}]
  %s4 = inlined_call_operand.vmem [shape: f32[1,8], index: 4, kind: input, shape index: {}]
  %s5 = inlined_call_operand.vmem [shape: f32[16,16], index: 5, kind: input, shape index: {}]
  %s6 = inlined_call_operand.vmem [shape: f32[1,16], index: 6, kind: input, shape index: {}]
  %s7 = inlined_call_operand.vmem [shape: f32[2,16,8], index: 7, kind: output, shape index: {}]
  %s8 = sld [smem:[#allocation0]]
  $region61: #{tpu_custom_call.1} parent=0
    _
  %s10 = ssub.s32 1, %s8
  %s11 = scalar_select 0, %s10, %s8
  loop: start=0, step=1, limit=4
  $region2: #{tpu_custom_call.1} parent=0 // loop_pre_header
    _
  $region3: #{tpu_custom_call.1} parent=0 // loop_header
    %s13 = sphi 0, %s17
    %p14 = scmp.ge.s32.totalorder %s13, 4
    %s23 = sphi 0, %s25
    %s26 = sphi 0, %s23
    %s27 = sphi 0, %s26
    %s43 = sphi 0, %s27
    %s47 = sphi 0, %s47
    %s49 = sphi 0, %s47
    %s50 = sphi 0, %s49
    %s64 = sphi 0, %s50
    %s68 = sphi 0, %s68
    %s70 = sphi 0, %s68
    %s71 = sphi 0, %s70
    %s85 = sphi 0, %s71
    %s89 = sphi 0, %s89
    %s91 = sphi 0, %s89
    %s92 = sphi 0, %s91
    %s106 = sphi 0, %s92
    %s110 = sphi 0, %s110
    %s112 = sphi 0, %s110
    %s113 = sphi 0, %s112
    %s127 = sphi 0, %s113
    %s131 = sphi 0, %s131
    %s133 = sphi 0, %s131
    %s134 = sphi 0, %s133
    %s148 = sphi 0, %s134
    %s152 = sphi 0, %s152
    %s154 = sphi 0, %s152
    %s155 = sphi 0, %s154
    %s169 = sphi 0, %s155
    %s175 = sphi 0, %s177
    %s178 = sphi 0, %s175
    %s179 = sphi 0, %s178
    %s195 = sphi 0, %s179
  $region4: #{tpu_custom_call.1} parent=0 // loop_header_branch
    %16 = sbr.rel (%p14) target = $region8
  $region5: #{tpu_custom_call.1} parent=0 // loop_body
    %s18 = ssub.s32 %s13, 1
    %s19 = ssub.s32 %s13, 2
    %s20 = sadd.s32 %s13, 1
    %s21 = ssub.s32 %s13, %s20
    %p22 = scmp.eq.s32.totalorder %s21, 0
    %s24 = sadd.s32 %s23, 1
    %s25 = scalar_select %p22, %s23, %s24
    %p28 = pneg %p22
    %p29 = scmp.eq.s32.totalorder %s13, 1
    %p30 = por %p28, %p29
    %p31 = scmp.ne.s32.totalorder %s23, %s26
    %p32 = scmp.eq.s32.totalorder %s13, 0
    %p33 = por %p31, %p32
    %p34 = scmp.ne.s32.totalorder %s23, %s26
    %p35 = scmp.eq.s32.totalorder %s18, 1
    %p36 = por %p34, %p35
    %p37 = scmp.ne.s32.totalorder %s26, %s27
    %p38 = scmp.eq.s32.totalorder %s18, 0
    %p39 = por %p37, %p38
    %p40 = scmp.ne.s32.totalorder %s26, %s27
    %p41 = scmp.eq.s32.totalorder %s19, 1
    %p42 = por %p40, %p41
    %p44 = scmp.ne.s32.totalorder %s27, %s43
    %p45 = scmp.eq.s32.totalorder %s19, 0
    %p46 = por %p44, %p45
    %s48 = sadd.s32 %s47, 1
    %p51 = scmp.eq.s32.totalorder %s13, 1
    %p52 = scmp.ne.s32.totalorder %s47, %s49
    %p53 = scmp.eq.s32.totalorder %s13, 0
    %p54 = por %p52, %p53
    %p55 = scmp.ne.s32.totalorder %s47, %s49
    %p56 = scmp.eq.s32.totalorder %s18, 1
    %p57 = por %p55, %p56
    %p58 = scmp.ne.s32.totalorder %s49, %s50
    %p59 = scmp.eq.s32.totalorder %s18, 0
    %p60 = por %p58, %p59
    %p61 = scmp.ne.s32.totalorder %s49, %s50
    %p62 = scmp.eq.s32.totalorder %s19, 1
    %p63 = por %p61, %p62
    %p65 = scmp.ne.s32.totalorder %s50, %s64
    %p66 = scmp.eq.s32.totalorder %s19, 0
    %p67 = por %p65, %p66
    %s69 = sadd.s32 %s68, 1
    %p72 = scmp.eq.s32.totalorder %s13, 1
    %p73 = scmp.ne.s32.totalorder %s68, %s70
    %p74 = scmp.eq.s32.totalorder %s13, 0
    %p75 = por %p73, %p74
    %p76 = scmp.ne.s32.totalorder %s68, %s70
    %p77 = scmp.eq.s32.totalorder %s18, 1
    %p78 = por %p76, %p77
    %p79 = scmp.ne.s32.totalorder %s70, %s71
    %p80 = scmp.eq.s32.totalorder %s18, 0
    %p81 = por %p79, %p80
    %p82 = scmp.ne.s32.totalorder %s70, %s71
    %p83 = scmp.eq.s32.totalorder %s19, 1
    %p84 = por %p82, %p83
    %p86 = scmp.ne.s32.totalorder %s71, %s85
    %p87 = scmp.eq.s32.totalorder %s19, 0
    %p88 = por %p86, %p87
    %s90 = sadd.s32 %s89, 1
    %p93 = scmp.eq.s32.totalorder %s13, 1
    %p94 = scmp.ne.s32.totalorder %s89, %s91
    %p95 = scmp.eq.s32.totalorder %s13, 0
    %p96 = por %p94, %p95
    %p97 = scmp.ne.s32.totalorder %s89, %s91
    %p98 = scmp.eq.s32.totalorder %s18, 1
    %p99 = por %p97, %p98
    %p100 = scmp.ne.s32.totalorder %s91, %s92
    %p101 = scmp.eq.s32.totalorder %s18, 0
    %p102 = por %p100, %p101
    %p103 = scmp.ne.s32.totalorder %s91, %s92
    %p104 = scmp.eq.s32.totalorder %s19, 1
    %p105 = por %p103, %p104
    %p107 = scmp.ne.s32.totalorder %s92, %s106
    %p108 = scmp.eq.s32.totalorder %s19, 0
    %p109 = por %p107, %p108
    %s111 = sadd.s32 %s110, 1
    %p114 = scmp.eq.s32.totalorder %s13, 1
    %p115 = scmp.ne.s32.totalorder %s110, %s112
    %p116 = scmp.eq.s32.totalorder %s13, 0
    %p117 = por %p115, %p116
    %p118 = scmp.ne.s32.totalorder %s110, %s112
    %p119 = scmp.eq.s32.totalorder %s18, 1
    %p120 = por %p118, %p119
    %p121 = scmp.ne.s32.totalorder %s112, %s113
    %p122 = scmp.eq.s32.totalorder %s18, 0
    %p123 = por %p121, %p122
    %p124 = scmp.ne.s32.totalorder %s112, %s113
    %p125 = scmp.eq.s32.totalorder %s19, 1
    %p126 = por %p124, %p125
    %p128 = scmp.ne.s32.totalorder %s113, %s127
    %p129 = scmp.eq.s32.totalorder %s19, 0
    %p130 = por %p128, %p129
    %s132 = sadd.s32 %s131, 1
    %p135 = scmp.eq.s32.totalorder %s13, 1
    %p136 = scmp.ne.s32.totalorder %s131, %s133
    %p137 = scmp.eq.s32.totalorder %s13, 0
    %p138 = por %p136, %p137
    %p139 = scmp.ne.s32.totalorder %s131, %s133
    %p140 = scmp.eq.s32.totalorder %s18, 1
    %p141 = por %p139, %p140
    %p142 = scmp.ne.s32.totalorder %s133, %s134
    %p143 = scmp.eq.s32.totalorder %s18, 0
    %p144 = por %p142, %p143
    %p145 = scmp.ne.s32.totalorder %s133, %s134
    %p146 = scmp.eq.s32.totalorder %s19, 1
    %p147 = por %p145, %p146
    %p149 = scmp.ne.s32.totalorder %s134, %s148
    %p150 = scmp.eq.s32.totalorder %s19, 0
    %p151 = por %p149, %p150
    %s153 = sadd.s32 %s152, 1
    %p156 = scmp.eq.s32.totalorder %s13, 1
    %p157 = scmp.ne.s32.totalorder %s152, %s154
    %p158 = scmp.eq.s32.totalorder %s13, 0
    %p159 = por %p157, %p158
    %p160 = scmp.ne.s32.totalorder %s152, %s154
    %p161 = scmp.eq.s32.totalorder %s18, 1
    %p162 = por %p160, %p161
    %p163 = scmp.ne.s32.totalorder %s154, %s155
    %p164 = scmp.eq.s32.totalorder %s18, 0
    %p165 = por %p163, %p164
    %p166 = scmp.ne.s32.totalorder %s154, %s155
    %p167 = scmp.eq.s32.totalorder %s19, 1
    %p168 = por %p166, %p167
    %p170 = scmp.ne.s32.totalorder %s155, %s169
    %p171 = scmp.eq.s32.totalorder %s19, 0
    %p172 = por %p170, %p171
    %s173 = ssub.s32 %s13, %s20
    %p174 = scmp.eq.s32.totalorder %s173, 0
    %s176 = sadd.s32 %s175, 1
    %s177 = scalar_select %p174, %s175, %s176
    %p180 = pneg %p174
    %p181 = scmp.eq.s32.totalorder %s13, 1
    %p182 = por %p180, %p181
    %p183 = scmp.ne.s32.totalorder %s175, %s178
    %p184 = scmp.eq.s32.totalorder %s13, 0
    %p185 = por %p183, %p184
    %p186 = scmp.ne.s32.totalorder %s175, %s178
    %p187 = scmp.eq.s32.totalorder %s18, 1
    %p188 = por %p186, %p187
    %p189 = scmp.ne.s32.totalorder %s178, %s179
    %p190 = scmp.eq.s32.totalorder %s18, 0
    %p191 = por %p189, %p190
    %p192 = scmp.ne.s32.totalorder %s178, %s179
    %p193 = scmp.eq.s32.totalorder %s19, 1
    %p194 = por %p192, %p193
    %p196 = scmp.ne.s32.totalorder %s179, %s195
    %p197 = scmp.eq.s32.totalorder %s19, 0
    %p198 = por %p196, %p197
    %p199 = scmp.le.s32.totalorder 1, %s13
    %p200 = scmp.lt.s32.totalorder %s13, 3
    %p201 = pnand %p199, %p200
    %p202 = pneg %p201
    // Predicated region
    $region9: #{tpu_custom_call.1} parent=5 // pred_check
      _
    $region10: #{tpu_custom_call.1} parent=5 // pred_check_branch
      %204 = sbr.rel (%p201) target = $region12
    $region11: #{tpu_custom_call.1} parent=5 // pred_region
      %s205 = ssub.s32 %s13, 1
      // Predicated region
      $region13: #{tpu_custom_call.1} parent=11 // pred_check
        %p206 = pneg %p60
      $region14: #{tpu_custom_call.1} parent=11 // pred_check_branch
        %208 = sbr.rel (%p206) target = $region16
      $region15: #{tpu_custom_call.1} parent=11 // pred_region
        _
      $region16: #{tpu_custom_call.1} parent=11 // pred_fallthru
        _
      // Predicated region
      $region17: #{tpu_custom_call.1} parent=11 // pred_check
        %p209 = pneg %p81
      $region18: #{tpu_custom_call.1} parent=11 // pred_check_branch
        %211 = sbr.rel (%p209) target = $region20
      $region19: #{tpu_custom_call.1} parent=11 // pred_region
        _
      $region20: #{tpu_custom_call.1} parent=11 // pred_fallthru
        _
      // Predicated region
      $region21: #{tpu_custom_call.1} parent=11 // pred_check
        %p212 = pneg %p102
      $region22: #{tpu_custom_call.1} parent=11 // pred_check_branch
        %214 = sbr.rel (%p212) target = $region24
      $region23: #{tpu_custom_call.1} parent=11 // pred_region
        _
      $region24: #{tpu_custom_call.1} parent=11 // pred_fallthru
        _
      // Predicated region
      $region25: #{tpu_custom_call.1} parent=11 // pred_check
        %p215 = pneg %p123
      $region26: #{tpu_custom_call.1} parent=11 // pred_check_branch
        %217 = sbr.rel (%p215) target = $region28
      $region27: #{tpu_custom_call.1} parent=11 // pred_region
        _
      $region28: #{tpu_custom_call.1} parent=11 // pred_fallthru
        _
      // Predicated region
      $region29: #{tpu_custom_call.1} parent=11 // pred_check
        %p218 = pneg %p144
      $region30: #{tpu_custom_call.1} parent=11 // pred_check_branch
        %220 = sbr.rel (%p218) target = $region32
      $region31: #{tpu_custom_call.1} parent=11 // pred_region
        _
      $region32: #{tpu_custom_call.1} parent=11 // pred_fallthru
        _
      // Predicated region
      $region33: #{tpu_custom_call.1} parent=11 // pred_check
        %p221 = pneg %p165
      $region34: #{tpu_custom_call.1} parent=11 // pred_check_branch
        %223 = sbr.rel (%p221) target = $region36
      $region35: #{tpu_custom_call.1} parent=11 // pred_region
        _
      $region36: #{tpu_custom_call.1} parent=11 // pred_fallthru
        _
    $region12: #{tpu_custom_call.1} parent=5 // pred_fallthru
      _
    %p224 = scmp.lt.s32.totalorder %s13, 2
    // Predicated region
    $region37: #{tpu_custom_call.1} parent=5 // pred_check
      %p225 = pneg %p224
    $region38: #{tpu_custom_call.1} parent=5 // pred_check_branch
      %227 = sbr.rel (%p225) target = $region40
    $region39: #{tpu_custom_call.1} parent=5 // pred_region
      // Predicated region
      $region41: #{tpu_custom_call.1} parent=39 // pred_check
        %p228 = pneg %p33
      $region42: #{tpu_custom_call.1} parent=39 // pred_check_branch
        %230 = sbr.rel (%p228) target = $region44
      $region43: #{tpu_custom_call.1} parent=39 // pred_region
        %p231 = scmp.lt.s32.totalorder %s13, 1
        %s232 = scalar_select %p231, %s13, 1
        %s233 = smul.addr %s232, 8
        %s234 = scalar_lea.vmem %s0, %s233
      $region44: #{tpu_custom_call.1} parent=39 // pred_fallthru
        _
    $region40: #{tpu_custom_call.1} parent=5 // pred_fallthru
      _
    %p235 = scmp.le.s32.totalorder 1, %s13
    %p236 = scmp.lt.s32.totalorder %s13, 3
    %p237 = pnand %p235, %p236
    %p238 = pneg %p237
    // Predicated region
    $region45: #{tpu_custom_call.1} parent=5 // pred_check
      _
    $region46: #{tpu_custom_call.1} parent=5 // pred_check_branch
      %240 = sbr.rel (%p237) target = $region48
    $region47: #{tpu_custom_call.1} parent=5 // pred_region
      %s241 = ssub.s32 %s13, 1
      %p242 = scmp.lt.s32.totalorder %s18, 1
      %s243 = scalar_select %p242, %s18, 1
      %s244 = smul.addr %s243, 8
      %s245 = scalar_lea.vmem %s0, %s244
      %p246 = pneg %p39
      %p247 = pneg %p36
      %p248 = pneg %p60
      %p249 = pneg %p57
      %p250 = pneg %p81
      %p251 = pneg %p78
      %p252 = pneg %p102
      %p253 = pneg %p99
      %p254 = pneg %p123
      %p255 = pneg %p120
      %p256 = pneg %p144
      %p257 = pneg %p141
      %p258 = pneg %p165
      %p259 = pneg %p162
      %p260 = pneg %p191
      %p261 = pneg %p188
      %p262 = scmp.lt.s32.totalorder %s18, 1
      %s263 = scalar_select %p262, %s18, 1
      %s264 = smul.addr %s263, 2
      %s265 = smul.addr %s264, 8
      %s266 = scalar_lea.vmem %s7, %s265
      %p267 = scmp.lt.s32.totalorder %s18, 1
      %s268 = scalar_select %p267, %s18, 1
      %s269 = smul.addr %s268, 8
      %s270 = scalar_lea.vmem %s0, %s269
      %p271 = scmp.lt.s32.totalorder %s18, 1
      %s272 = scalar_select %p271, %s18, 1
      %s273 = smul.addr %s272, 2
      %s274 = smul.addr %s273, 8
      %s275 = scalar_lea.vmem %s7, %s274
      %v276 = vld [vmem:[%s270] sm:$0xff]
      %v277 = vld [vmem:[%s1] sm:$0xff]
      %v278 = vld [vmem:[%s1 + $0x8] sm:$0xff]
      %v279 = vld [vmem:[%s2] sm:$0x1]
      %v281 = vlaneseq
      %v282 = vshrl.u32 %v281, 7
      %v283 = vsub.s32 0, %v282
      %v284 = vrot.slane %v279, %v283
      %vm286 = vcmask 130048
      %v288 = vsel %vm286, %v276, 0
      %290 = vmatprep.subr.mxu0 0.0
      %291 = vmatpush1.msra.mxu0 %v277
      %292 = vmatprep.subr.mxu0 0.0
      %293 = vmatpush1.msra.mxu0 %v278
      %294 = vmatprep.subr.mxu0 0.0
      %295 = vmatpush1.msra.mxu0 0.0
      %296 = vmatprep.subr.mxu0 0.0
      %297 = vmatpush1.msra.mxu0 0.0
      %298 = vmatprep.subr.mxu0 0.0
      %299 = vmatpush1.msra.mxu0 0.0
      %300 = vmatprep.subr.mxu0 0.0
      %301 = vmatpush1.msra.mxu0 0.0
      %302 = vmatprep.subr.mxu0 0.0
      %303 = vmatpush1.msra.mxu0 0.0
      %304 = vmatprep.subr.mxu0 0.0
      %305 = vmatpush1.msra.mxu0 0.0
      %306 = vmatprep.subr.mxu0 0.0
      %307 = vmatpush1.msra.mxu0 0.0
      %308 = vmatprep.subr.mxu0 0.0
      %309 = vmatpush1.msra.mxu0 0.0
      %310 = vmatprep.subr.mxu0 0.0
      %311 = vmatpush1.msra.mxu0 0.0
      %312 = vmatprep.subr.mxu0 0.0
      %313 = vmatpush1.msra.mxu0 0.0
      %314 = vmatprep.subr.mxu0 0.0
      %315 = vmatpush1.msra.mxu0 0.0
      %316 = vmatprep.subr.mxu0 0.0
      %317 = vmatpush1.msra.mxu0 0.0
      %318 = vmatprep.subr.mxu0 0.0
      %319 = vmatpush1.msra.mxu0 0.0
      %320 = vmatprep.subr.mxu0 0.0
      %321 = vmatpush1.msra.mxu0 0.0
      %322 = vmatprep.subr.mxu0 0.0
      %323 = vmatpush1.msra.mxu0 0.0
      %324 = vmatprep.subr.mxu0 0.0
      %325 = vmatpush1.msra.mxu0 0.0
      %326 = vmatprep.subr.mxu0 0.0
      %327 = vmatpush1.msra.mxu0 0.0
      %328 = vmatprep.subr.mxu0 0.0
      %329 = vmatpush1.msra.mxu0 0.0
      %330 = vmatprep.subr.mxu0 0.0
      %331 = vmatpush1.msra.mxu0 0.0
      %332 = vmatprep.subr.mxu0 0.0
      %333 = vmatpush1.msra.mxu0 0.0
      %334 = vmatprep.subr.mxu0 0.0
      %335 = vmatpush1.msra.mxu0 0.0
      %336 = vmatprep.subr.mxu0 0.0
      %337 = vmatpush1.msra.mxu0 0.0
      %338 = vmatprep.subr.mxu0 0.0
      %339 = vmatpush1.msra.mxu0 0.0
      %340 = vmatprep.subr.mxu0 0.0
      %341 = vmatpush1.msra.mxu0 0.0
      %342 = vmatprep.subr.mxu0 0.0
      %343 = vmatpush1.msra.mxu0 0.0
      %344 = vmatprep.subr.mxu0 0.0
      %345 = vmatpush1.msra.mxu0 0.0
      %346 = vmatprep.subr.mxu0 0.0
      %347 = vmatpush1.msra.mxu0 0.0
      %348 = vmatprep.subr.mxu0 0.0
      %349 = vmatpush1.msra.mxu0 0.0
      %350 = vmatprep.subr.mxu0 0.0
      %351 = vmatpush1.msra.mxu0 0.0
      %352 = vmatprep.subr.mxu0 0.0
      %353 = vmatpush1.msra.mxu0 0.0
      %354 = vmatprep.mubr.f32.mxu0 0.0
      %355 = vmatmul.mubr.f32.gmra.mrb[0].mxu0 %v288
      %v356 = vpop.f32.mrb[0].mxu0
      %v357 = vadd.f32 %v284, %v356
      %v358 = vpop.f32.mrb[0].mxu0
      %359 = vdwg.mxu0
      %v360 = vld [vmem:[%s3] sm:$0xff]
      %v361 = vld [vmem:[%s3 + $0x8] sm:$0xff]
      %v362 = vld [vmem:[%s4] sm:$0x1]
      %v364 = vlaneseq
      %v365 = vshrl.u32 %v364, 7
      %v366 = vsub.s32 0, %v365
      %v367 = vrot.slane %v362, %v366
      %369 = vmatprep.subr.mxu0 0.0
      %370 = vmatpush1.msra.mxu0 %v360
      %371 = vmatprep.subr.mxu0 0.0
      %372 = vmatpush1.msra.mxu0 %v361
      %373 = vmatprep.subr.mxu0 0.0
      %374 = vmatpush1.msra.mxu0 0.0
      %375 = vmatprep.subr.mxu0 0.0
      %376 = vmatpush1.msra.mxu0 0.0
      %377 = vmatprep.subr.mxu0 0.0
      %378 = vmatpush1.msra.mxu0 0.0
      %379 = vmatprep.subr.mxu0 0.0
      %380 = vmatpush1.msra.mxu0 0.0
      %381 = vmatprep.subr.mxu0 0.0
      %382 = vmatpush1.msra.mxu0 0.0
      %383 = vmatprep.subr.mxu0 0.0
      %384 = vmatpush1.msra.mxu0 0.0
      %385 = vmatprep.subr.mxu0 0.0
      %386 = vmatpush1.msra.mxu0 0.0
      %387 = vmatprep.subr.mxu0 0.0
      %388 = vmatpush1.msra.mxu0 0.0
      %389 = vmatprep.subr.mxu0 0.0
      %390 = vmatpush1.msra.mxu0 0.0
      %391 = vmatprep.subr.mxu0 0.0
      %392 = vmatpush1.msra.mxu0 0.0
      %393 = vmatprep.subr.mxu0 0.0
      %394 = vmatpush1.msra.mxu0 0.0
      %395 = vmatprep.subr.mxu0 0.0
      %396 = vmatpush1.msra.mxu0 0.0
      %397 = vmatprep.subr.mxu0 0.0
      %398 = vmatpush1.msra.mxu0 0.0
      %399 = vmatprep.subr.mxu0 0.0
      %400 = vmatpush1.msra.mxu0 0.0
      %401 = vmatprep.subr.mxu0 0.0
      %402 = vmatpush1.msra.mxu0 0.0
      %403 = vmatprep.subr.mxu0 0.0
      %404 = vmatpush1.msra.mxu0 0.0
      %405 = vmatprep.subr.mxu0 0.0
      %406 = vmatpush1.msra.mxu0 0.0
      %407 = vmatprep.subr.mxu0 0.0
      %408 = vmatpush1.msra.mxu0 0.0
      %409 = vmatprep.subr.mxu0 0.0
      %410 = vmatpush1.msra.mxu0 0.0
      %411 = vmatprep.subr.mxu0 0.0
      %412 = vmatpush1.msra.mxu0 0.0
      %413 = vmatprep.subr.mxu0 0.0
      %414 = vmatpush1.msra.mxu0 0.0
      %415 = vmatprep.subr.mxu0 0.0
      %416 = vmatpush1.msra.mxu0 0.0
      %417 = vmatprep.subr.mxu0 0.0
      %418 = vmatpush1.msra.mxu0 0.0
      %419 = vmatprep.subr.mxu0 0.0
      %420 = vmatpush1.msra.mxu0 0.0
      %421 = vmatprep.subr.mxu0 0.0
      %422 = vmatpush1.msra.mxu0 0.0
      %423 = vmatprep.subr.mxu0 0.0
      %424 = vmatpush1.msra.mxu0 0.0
      %425 = vmatprep.subr.mxu0 0.0
      %426 = vmatpush1.msra.mxu0 0.0
      %427 = vmatprep.subr.mxu0 0.0
      %428 = vmatpush1.msra.mxu0 0.0
      %429 = vmatprep.subr.mxu0 0.0
      %430 = vmatpush1.msra.mxu0 0.0
      %431 = vmatprep.subr.mxu0 0.0
      %432 = vmatpush1.msra.mxu0 0.0
      %433 = vmatprep.mubr.f32.mxu0 0.0
      %434 = vmatmul.mubr.f32.gmra.mrb[0].mxu0 %v288
      %v435 = vpop.f32.mrb[0].mxu0
      %v436 = vadd.f32 %v367, %v435
      %v437 = vpop.f32.mrb[0].mxu0
      %438 = vdwg.mxu0
      %v439 = vld [vmem:[%s5] sm:$0xff]
      %v440 = vld [vmem:[%s5 + $0x8] sm:$0xff]
      %v441 = vld [vmem:[%s6] sm:$0x1]
      %v443 = vlaneseq
      %v444 = vshrl.u32 %v443, 7
      %v445 = vsub.s32 0, %v444
      %v446 = vrot.slane %v441, %v445
      %448 = vmatprep.subr.mxu0 0.0
      %449 = vmatpush1.msra.mxu0 %v439
      %450 = vmatprep.subr.mxu0 0.0
      %451 = vmatpush1.msra.mxu0 %v440
      %452 = vmatprep.subr.mxu0 0.0
      %453 = vmatpush1.msra.mxu0 0.0
      %454 = vmatprep.subr.mxu0 0.0
      %455 = vmatpush1.msra.mxu0 0.0
      %456 = vmatprep.subr.mxu0 0.0
      %457 = vmatpush1.msra.mxu0 0.0
      %458 = vmatprep.subr.mxu0 0.0
      %459 = vmatpush1.msra.mxu0 0.0
      %460 = vmatprep.subr.mxu0 0.0
      %461 = vmatpush1.msra.mxu0 0.0
      %462 = vmatprep.subr.mxu0 0.0
      %463 = vmatpush1.msra.mxu0 0.0
      %464 = vmatprep.subr.mxu0 0.0
      %465 = vmatpush1.msra.mxu0 0.0
      %466 = vmatprep.subr.mxu0 0.0
      %467 = vmatpush1.msra.mxu0 0.0
      %468 = vmatprep.subr.mxu0 0.0
      %469 = vmatpush1.msra.mxu0 0.0
      %470 = vmatprep.subr.mxu0 0.0
      %471 = vmatpush1.msra.mxu0 0.0
      %472 = vmatprep.subr.mxu0 0.0
      %473 = vmatpush1.msra.mxu0 0.0
      %474 = vmatprep.subr.mxu0 0.0
      %475 = vmatpush1.msra.mxu0 0.0
      %476 = vmatprep.subr.mxu0 0.0
      %477 = vmatpush1.msra.mxu0 0.0
      %478 = vmatprep.subr.mxu0 0.0
      %479 = vmatpush1.msra.mxu0 0.0
      %480 = vmatprep.subr.mxu0 0.0
      %481 = vmatpush1.msra.mxu0 0.0
      %482 = vmatprep.subr.mxu0 0.0
      %483 = vmatpush1.msra.mxu0 0.0
      %484 = vmatprep.subr.mxu0 0.0
      %485 = vmatpush1.msra.mxu0 0.0
      %486 = vmatprep.subr.mxu0 0.0
      %487 = vmatpush1.msra.mxu0 0.0
      %488 = vmatprep.subr.mxu0 0.0
      %489 = vmatpush1.msra.mxu0 0.0
      %490 = vmatprep.subr.mxu0 0.0
      %491 = vmatpush1.msra.mxu0 0.0
      %492 = vmatprep.subr.mxu0 0.0
      %493 = vmatpush1.msra.mxu0 0.0
      %494 = vmatprep.subr.mxu0 0.0
      %495 = vmatpush1.msra.mxu0 0.0
      %496 = vmatprep.subr.mxu0 0.0
      %497 = vmatpush1.msra.mxu0 0.0
      %498 = vmatprep.subr.mxu0 0.0
      %499 = vmatpush1.msra.mxu0 0.0
      %500 = vmatprep.subr.mxu0 0.0
      %501 = vmatpush1.msra.mxu0 0.0
      %502 = vmatprep.subr.mxu0 0.0
      %503 = vmatpush1.msra.mxu0 0.0
      %504 = vmatprep.subr.mxu0 0.0
      %505 = vmatpush1.msra.mxu0 0.0
      %506 = vmatprep.subr.mxu0 0.0
      %507 = vmatpush1.msra.mxu0 0.0
      %508 = vmatprep.subr.mxu0 0.0
      %509 = vmatpush1.msra.mxu0 0.0
      %510 = vmatprep.subr.mxu0 0.0
      %511 = vmatpush1.msra.mxu0 0.0
      %512 = vmatprep.mubr.f32.mxu0 0.0
      %513 = vmatmul.mubr.f32.gmra.mrb[0].mxu0 %v288
      %v514 = vpop.f32.mrb[0].mxu0
      %v515 = vadd.f32 %v446, %v514
      %v516 = vpop.f32.mrb[0].mxu0
      %517 = vdwg.mxu0
      %v518 = vmul.f32 %v357, %v357
      %vm519 = vcmask 64512
      %v520 = vsel %vm519, %v518, 0.0
      %521 = vadd.xlane.f32.xlu0 %v520
      %v522 = vpop.xlane.xlu0 %521
      %v523 = vmax.f32 %v522, 1e-24
      %v524 = vmul.f32 %v436, %v436
      %v525 = vsel %vm519, %v524, 0.0
      %526 = vadd.xlane.f32.xlu0 %v525
      %v527 = vpop.xlane.xlu0 %526
      %v528 = vmax.f32 %v527, 1e-24
      %v529 = vrsqrt.pop %v523
      %v530 = vmul.f32 %v529, 0.25
      %v531 = vmul.f32 %v357, %v530
      %532 = vst.msk [vmem:[#allocation2] sm:$0xff] %vm519, %v531
      %v533 = vrsqrt.pop %v528
      %v534 = vmul.f32 %v436, %v533
      %535 = vst.msk [vmem:[#allocation3] sm:$0xff] %vm519, %v534
      %536 = vst.msk [vmem:[#allocation4] sm:$0xff] %vm286, %v515
      %v537 = vld [vmem:[#allocation2] sm:$0xff]
      %v538 = vld [vmem:[#allocation3] sm:$0xff]
      %v539 = vld [vmem:[#allocation4] sm:$0xff]
      %v541 = vsel %vm519, %v538, 0
      %v544 = vsel %vm519, %v537, 0
      %546 = vmatprep.subr.mxu0 0.0
      %547 = vmatpush1.xpose.msra.mxu0 %v544
      %548 = vmatprep.subr.mxu0 0.0
      %549 = vmatpush1.xpose.msra.mxu0 0.0
      %550 = vmatprep.subr.mxu0 0.0
      %551 = vmatpush1.xpose.msra.mxu0 0.0
      %552 = vmatprep.subr.mxu0 0.0
      %553 = vmatpush1.xpose.msra.mxu0 0.0
      %554 = vmatprep.subr.mxu0 0.0
      %555 = vmatpush1.xpose.msra.mxu0 0.0
      %556 = vmatprep.subr.mxu0 0.0
      %557 = vmatpush1.xpose.msra.mxu0 0.0
      %558 = vmatprep.subr.mxu0 0.0
      %559 = vmatpush1.xpose.msra.mxu0 0.0
      %560 = vmatprep.subr.mxu0 0.0
      %561 = vmatpush1.xpose.msra.mxu0 0.0
      %562 = vmatprep.subr.mxu0 0.0
      %563 = vmatpush1.xpose.msra.mxu0 0.0
      %564 = vmatprep.subr.mxu0 0.0
      %565 = vmatpush1.xpose.msra.mxu0 0.0
      %566 = vmatprep.subr.mxu0 0.0
      %567 = vmatpush1.xpose.msra.mxu0 0.0
      %568 = vmatprep.subr.mxu0 0.0
      %569 = vmatpush1.xpose.msra.mxu0 0.0
      %570 = vmatprep.subr.mxu0 0.0
      %571 = vmatpush1.xpose.msra.mxu0 0.0
      %572 = vmatprep.subr.mxu0 0.0
      %573 = vmatpush1.xpose.msra.mxu0 0.0
      %574 = vmatprep.subr.mxu0 0.0
      %575 = vmatpush1.xpose.msra.mxu0 0.0
      %576 = vmatprep.subr.mxu0 0.0
      %577 = vmatpush1.xpose.msra.mxu0 0.0
      %578 = vmatprep.subr.mxu0 0.0
      %579 = vmatpush1.xpose.msra.mxu0 0.0
      %580 = vmatprep.subr.mxu0 0.0
      %581 = vmatpush1.xpose.msra.mxu0 0.0
      %582 = vmatprep.subr.mxu0 0.0
      %583 = vmatpush1.xpose.msra.mxu0 0.0
      %584 = vmatprep.subr.mxu0 0.0
      %585 = vmatpush1.xpose.msra.mxu0 0.0
      %586 = vmatprep.subr.mxu0 0.0
      %587 = vmatpush1.xpose.msra.mxu0 0.0
      %588 = vmatprep.subr.mxu0 0.0
      %589 = vmatpush1.xpose.msra.mxu0 0.0
      %590 = vmatprep.subr.mxu0 0.0
      %591 = vmatpush1.xpose.msra.mxu0 0.0
      %592 = vmatprep.subr.mxu0 0.0
      %593 = vmatpush1.xpose.msra.mxu0 0.0
      %594 = vmatprep.subr.mxu0 0.0
      %595 = vmatpush1.xpose.msra.mxu0 0.0
      %596 = vmatprep.subr.mxu0 0.0
      %597 = vmatpush1.xpose.msra.mxu0 0.0
      %598 = vmatprep.subr.mxu0 0.0
      %599 = vmatpush1.xpose.msra.mxu0 0.0
      %600 = vmatprep.subr.mxu0 0.0
      %601 = vmatpush1.xpose.msra.mxu0 0.0
      %602 = vmatprep.subr.mxu0 0.0
      %603 = vmatpush1.xpose.msra.mxu0 0.0
      %604 = vmatprep.subr.mxu0 0.0
      %605 = vmatpush1.xpose.msra.mxu0 0.0
      %606 = vmatprep.subr.mxu0 0.0
      %607 = vmatpush1.xpose.msra.mxu0 0.0
      %608 = vmatprep.subr.mxu0 0.0
      %609 = vmatpush1.xpose.msra.mxu0 0.0
      %610 = vmatprep.mubr.f32.mxu0 0.0
      %611 = vmatmul.mubr.f32.gmra.mrb[0].mxu0 %v541
      %v612 = vpop.f32.mrb[0].mxu0
      %v613 = vadd.f32 0.0, %v612
      %v614 = vpop.f32.mrb[0].mxu0
      %615 = vdwg.mxu0
      %v616 = vmul.f32 %v613, 1.442695
      %v617 = vpow.pop %v616
      %v618 = vsel %vm519, %v617, 0.0
      %619 = vadd.xlane.f32.xlu0 %v618
      %v620 = vpop.xlane.xlu0 %619
      %v621 = vrcp.pop %v620
      %v622 = vmul.f32 %v617, %v621
      %623 = vxpose.xlu0.b32.start [1/16] %v539, 128
      %624 = vxpose.xlu0.b32.cont [2/16] 0.0, 128
      %625 = vxpose.xlu0.b32.cont [3/16] 0.0, 128
      %626 = vxpose.xlu0.b32.cont [4/16] 0.0, 128
      %627 = vxpose.xlu0.b32.cont [5/16] 0.0, 128
      %628 = vxpose.xlu0.b32.cont [6/16] 0.0, 128
      %629 = vxpose.xlu0.b32.cont [7/16] 0.0, 128
      %630 = vxpose.xlu0.b32.cont [8/16] 0.0, 128
      %631 = vxpose.xlu0.b32.cont [9/16] 0.0, 128
      %632 = vxpose.xlu0.b32.cont [10/16] 0.0, 128
      %633 = vxpose.xlu0.b32.cont [11/16] 0.0, 128
      %634 = vxpose.xlu0.b32.cont [12/16] 0.0, 128
      %635 = vxpose.xlu0.b32.cont [13/16] 0.0, 128
      %636 = vxpose.xlu0.b32.cont [14/16] 0.0, 128
      %637 = vxpose.xlu0.b32.cont [15/16] 0.0, 128
      %638 = vxpose.xlu0.b32.end [16/16] 0.0, 128
      %v639 = vpop.trf.xlu0
      %v640 = vpop.trf.xlu0
      %v641 = vpop.trf.xlu0
      %v642 = vpop.trf.xlu0
      %v643 = vpop.trf.xlu0
      %v644 = vpop.trf.xlu0
      %v645 = vpop.trf.xlu0
      %v646 = vpop.trf.xlu0
      %v647 = vpop.trf.xlu0
      %v648 = vpop.trf.xlu0
      %v649 = vpop.trf.xlu0
      %v650 = vpop.trf.xlu0
      %v651 = vpop.trf.xlu0
      %v652 = vpop.trf.xlu0
      %v653 = vpop.trf.xlu0
      %v654 = vpop.trf.xlu0
      %v656 = vsel %vm519, %v639, 0
      %v659 = vsel %vm519, %v640, 0
      %v662 = vsel %vm519, %v622, 0
      %664 = vmatprep.subr.mxu0 0.0
      %665 = vmatpush1.xpose.msra.mxu0 %v662
      %666 = vmatprep.subr.mxu0 0.0
      %667 = vmatpush1.xpose.msra.mxu0 0.0
      %668 = vmatprep.subr.mxu0 0.0
      %669 = vmatpush1.xpose.msra.mxu0 0.0
      %670 = vmatprep.subr.mxu0 0.0
      %671 = vmatpush1.xpose.msra.mxu0 0.0
      %672 = vmatprep.subr.mxu0 0.0
      %673 = vmatpush1.xpose.msra.mxu0 0.0
      %674 = vmatprep.subr.mxu0 0.0
      %675 = vmatpush1.xpose.msra.mxu0 0.0
      %676 = vmatprep.subr.mxu0 0.0
      %677 = vmatpush1.xpose.msra.mxu0 0.0
      %678 = vmatprep.subr.mxu0 0.0
      %679 = vmatpush1.xpose.msra.mxu0 0.0
      %680 = vmatprep.subr.mxu0 0.0
      %681 = vmatpush1.xpose.msra.mxu0 0.0
      %682 = vmatprep.subr.mxu0 0.0
      %683 = vmatpush1.xpose.msra.mxu0 0.0
      %684 = vmatprep.subr.mxu0 0.0
      %685 = vmatpush1.xpose.msra.mxu0 0.0
      %686 = vmatprep.subr.mxu0 0.0
      %687 = vmatpush1.xpose.msra.mxu0 0.0
      %688 = vmatprep.subr.mxu0 0.0
      %689 = vmatpush1.xpose.msra.mxu0 0.0
      %690 = vmatprep.subr.mxu0 0.0
      %691 = vmatpush1.xpose.msra.mxu0 0.0
      %692 = vmatprep.subr.mxu0 0.0
      %693 = vmatpush1.xpose.msra.mxu0 0.0
      %694 = vmatprep.subr.mxu0 0.0
      %695 = vmatpush1.xpose.msra.mxu0 0.0
      %696 = vmatprep.subr.mxu0 0.0
      %697 = vmatpush1.xpose.msra.mxu0 0.0
      %698 = vmatprep.subr.mxu0 0.0
      %699 = vmatpush1.xpose.msra.mxu0 0.0
      %700 = vmatprep.subr.mxu0 0.0
      %701 = vmatpush1.xpose.msra.mxu0 0.0
      %702 = vmatprep.subr.mxu0 0.0
      %703 = vmatpush1.xpose.msra.mxu0 0.0
      %704 = vmatprep.subr.mxu0 0.0
      %705 = vmatpush1.xpose.msra.mxu0 0.0
      %706 = vmatprep.subr.mxu0 0.0
      %707 = vmatpush1.xpose.msra.mxu0 0.0
      %708 = vmatprep.subr.mxu0 0.0
      %709 = vmatpush1.xpose.msra.mxu0 0.0
      %710 = vmatprep.subr.mxu0 0.0
      %711 = vmatpush1.xpose.msra.mxu0 0.0
      %712 = vmatprep.subr.mxu0 0.0
      %713 = vmatpush1.xpose.msra.mxu0 0.0
      %714 = vmatprep.subr.mxu0 0.0
      %715 = vmatpush1.xpose.msra.mxu0 0.0
      %716 = vmatprep.subr.mxu0 0.0
      %717 = vmatpush1.xpose.msra.mxu0 0.0
      %718 = vmatprep.subr.mxu0 0.0
      %719 = vmatpush1.xpose.msra.mxu0 0.0
      %720 = vmatprep.subr.mxu0 0.0
      %721 = vmatpush1.xpose.msra.mxu0 0.0
      %722 = vmatprep.subr.mxu0 0.0
      %723 = vmatpush1.xpose.msra.mxu0 0.0
      %724 = vmatprep.subr.mxu0 0.0
      %725 = vmatpush1.xpose.msra.mxu0 0.0
      %726 = vmatprep.subr.mxu0 0.0
      %727 = vmatpush1.xpose.msra.mxu0 0.0
      %728 = vmatprep.mubr.f32.mxu0 0.0
      %729 = vmatmul.mubr.f32.gmra.mrb[0].mxu0 %v656
      %v730 = vpop.f32.mrb[0].mxu0
      %v731 = vadd.f32 0.0, %v730
      %v732 = vpop.f32.mrb[0].mxu0
      %733 = vmatprep.mubr.f32.mxu0 0.0
      %734 = vmatmul.mubr.f32.gmra.mrb[0].mxu0 %v659
      %v735 = vpop.f32.mrb[0].mxu0
      %v736 = vadd.f32 0.0, %v735
      %v737 = vpop.f32.mrb[0].mxu0
      %738 = vdwg.mxu0
      %739 = vst.msk [vmem:[%s275] sm:$0xff] %vm519, %v731
      %740 = vst.msk [vmem:[%s275 + $0x8] sm:$0xff] %vm519, %v736
      %p741 = scmp.lt.s32.totalorder %s18, 1
      %s742 = scalar_select %p741, %s18, 1
      %s743 = smul.addr %s742, 2
      %s744 = smul.addr %s743, 8
      %s745 = scalar_lea.vmem %s7, %s744
      // Predicated region
      $region49: #{tpu_custom_call.1} parent=47 // pred_check
        %p746 = pneg %p188
      $region50: #{tpu_custom_call.1} parent=47 // pred_check_branch
        %748 = sbr.rel (%p746) target = $region52
      $region51: #{tpu_custom_call.1} parent=47 // pred_region
        _
      $region52: #{tpu_custom_call.1} parent=47 // pred_fallthru
        _
    $region48: #{tpu_custom_call.1} parent=5 // pred_fallthru
      _
    %p749 = scmp.le.s32.totalorder 2, %s13
    // Predicated region
    $region53: #{tpu_custom_call.1} parent=5 // pred_check
      %p750 = pneg %p749
    $region54: #{tpu_custom_call.1} parent=5 // pred_check_branch
      %752 = sbr.rel (%p750) target = $region56
    $region55: #{tpu_custom_call.1} parent=5 // pred_region
      %s753 = ssub.s32 %s13, 2
      // Predicated region
      $region57: #{tpu_custom_call.1} parent=55 // pred_check
        %p754 = pneg %p194
      $region58: #{tpu_custom_call.1} parent=55 // pred_check_branch
        %756 = sbr.rel (%p754) target = $region60
      $region59: #{tpu_custom_call.1} parent=55 // pred_region
        %p757 = scmp.lt.s32.totalorder %s19, 1
        %s758 = scalar_select %p757, %s19, 1
        %s759 = smul.addr %s758, 2
        %s760 = smul.addr %s759, 8
        %s761 = scalar_lea.vmem %s7, %s760
      $region60: #{tpu_custom_call.1} parent=55 // pred_fallthru
        _
    $region56: #{tpu_custom_call.1} parent=5 // pred_fallthru
      _
  $region6: #{tpu_custom_call.1} parent=0 // loop_footer
    %s17 = sadd.s32 1, %s13
  $region7: #{tpu_custom_call.1} parent=0 // loop_footer_branch
    %12 = sbr.rel target = $region3
  $region8: #{tpu_custom_call.1} parent=0 // loop_exit
    _

</llo_original>
